<compile_context>
chip_gen: v7x
topology: tpu7x:2x2x1
jax: 0.10.0
libtpu: 0.0.40
codegen_flags: <defaults>
</compile_context>

<pallas_src>
import math

import jax
import jax.numpy as jnp
from jax.experimental import pallas as pl
from jax.experimental.pallas import tpu as pltpu


def _round_up(a: int, b: int) -> int:
    return ((a + b - 1) // b) * b


def _lowrank_kernel(x_ref, w1_ref, w2_ref, b_ref, o_ref):
    # x_ref:  (TM, in_pad)      VMEM
    # w1_ref: (in_pad, rk_pad)  VMEM   (= padded W1.T), grid-resident
    # w2_ref: (rk_pad, out_pad) VMEM   (= padded W2.T), grid-resident
    # b_ref:  (1, out_pad)      VMEM   (f32), grid-resident
    # o_ref:  (TM, out_pad)     VMEM
    h = jnp.dot(x_ref[...], w1_ref[...], preferred_element_type=jnp.float32)
    y = jnp.dot(h.astype(w2_ref.dtype), w2_ref[...],
                preferred_element_type=jnp.float32)
    o_ref[...] = (y + b_ref[...]).astype(o_ref.dtype)


def _pick_tm(m_rows: int, in_p: int, rk_p: int, out_p: int,
             itemsize: int, tm_max: int = 512,
             vmem_budget: int = 24 << 20) -> int:
    """Largest row tile (multiple of 8, <= tm_max) fitting the VMEM budget."""
    tm = max(8, min(tm_max, _round_up(m_rows, 8)))
    weights = (in_p * rk_p + rk_p * out_p + out_p) * itemsize
    while tm > 8:
        # double-buffered x/out tiles + f32 intermediate h + f32 epilogue y
        per_tile = (2 * tm * (in_p + out_p) * itemsize
                    + tm * (rk_p + out_p) * 4)
        if weights + per_tile <= vmem_budget:
            break
        tm //= 2
    return max(8, tm)


def low_rank_linear(x, w1, w2, b, *, tm_max: int = 512, compute_dtype=None):
    """x: (..., in_features); w1: (rank, in); w2: (out, rank); b: (out,)."""
    in_features = x.shape[-1]
    rank = w1.shape[0]
    out_features = w2.shape[0]
    lead = x.shape[:-1]
    m = math.prod(lead) if lead else 1

    op_dtype = jnp.dtype(compute_dtype) if compute_dtype is not None else x.dtype

    # Pad lane / contraction axes to multiples of 128 (lane-dense MXU tiles,
    # unmasked output stores).  Pad M to a multiple of the row tile.
    in_p = _round_up(in_features, 128)
    rk_p = _round_up(rank, 128)
    out_p = _round_up(out_features, 128)

    tm = _pick_tm(m, in_p, rk_p, out_p, op_dtype.itemsize, tm_max=tm_max)
    m_p = _round_up(m, tm)

    x2d = jnp.pad(x.reshape(m, in_features).astype(op_dtype),
                  ((0, m_p - m), (0, in_p - in_features)))
    # Transpose + pad (+ optional cast) fuse into a single copy per weight;
    # the weights are grid-resident, so this is a one-time per-call cost.
    w1t = jnp.pad(w1.T.astype(op_dtype),
                  ((0, in_p - in_features), (0, rk_p - rank)))
    w2t = jnp.pad(w2.T.astype(op_dtype),
                  ((0, rk_p - rank), (0, out_p - out_features)))
    b2d = jnp.pad(b.astype(jnp.float32).reshape(1, out_features),
                  ((0, 0), (0, out_p - out_features)))

    grid = (m_p // tm,)
    flops = 2 * m_p * in_p * rk_p + 2 * m_p * rk_p * out_p
    bytes_accessed = (
        x2d.size * x2d.dtype.itemsize
        + w1t.size * w1t.dtype.itemsize
        + w2t.size * w2t.dtype.itemsize
        + b2d.size * b2d.dtype.itemsize
        + m_p * out_p * jnp.dtype(x.dtype).itemsize)

    out2d = pl.pallas_call(
        _lowrank_kernel,
        out_shape=jax.ShapeDtypeStruct((m_p, out_p), x.dtype),
        grid_spec=pltpu.PrefetchScalarGridSpec(
            num_scalar_prefetch=0,
            grid=grid,
            in_specs=[
                pl.BlockSpec((tm, in_p), lambda i: (i, 0)),
                pl.BlockSpec((in_p, rk_p), lambda i: (0, 0)),
                pl.BlockSpec((rk_p, out_p), lambda i: (0, 0)),
                pl.BlockSpec((1, out_p), lambda i: (0, 0)),
            ],
            out_specs=pl.BlockSpec((tm, out_p), lambda i: (i, 0)),
        ),
        compiler_params=pltpu.CompilerParams(
            dimension_semantics=("parallel",),
        ),
        cost_estimate=pl.CostEstimate(
            flops=flops, transcendentals=0, bytes_accessed=bytes_accessed),
    )(x2d, w1t, w2t, b2d)

    out2d = out2d[:m, :out_features]
    return out2d.reshape(*lead, out_features)


if __name__ == "__main__":
    # Module config: in_features=32, out_features=32, rank_factor=4 -> rank=8
    in_features = 32
    out_features = 32
    rank_factor = 4
    rank = in_features // rank_factor

    key = jax.random.PRNGKey(0)
    kx, k1, k2, kb = jax.random.split(key, 4)

    # Input: (batch=2, seq=8, in_features=32)
    x = jax.random.normal(kx, (2, 8, in_features), dtype=jnp.float32)

    # Deterministic parameter init (PyTorch Linear-style uniform bounds).
    bound1 = 1.0 / (in_features ** 0.5)
    bound2 = 1.0 / (rank ** 0.5)
    w1 = jax.random.uniform(k1, (rank, in_features), jnp.float32, -bound1, bound1)
    w2 = jax.random.uniform(k2, (out_features, rank), jnp.float32, -bound2, bound2)
    b = jax.random.uniform(kb, (out_features,), jnp.float32, -bound2, bound2)

    y = low_rank_linear(x, w1, w2, b)
    y = jax.block_until_ready(y)

    # Reference check (plain JAX).
    y_ref = (x @ w1.T) @ w2.T + b
    assert y.shape == y_ref.shape
    assert jnp.allclose(y, y_ref, atol=1e-5, rtol=1e-5), float(
        jnp.max(jnp.abs(y - y_ref))
    )

    print("KERNEL_OK")
</pallas_src>

<mosaic_0001>
module attributes {stable_mosaic.version = 11 : i64} {
  func.func @_lowrank_kernel(%arg0: i32, %arg1: memref<16x128xf32, #tpu.memory_space<vmem>>, %arg2: memref<128x128xf32, #tpu.memory_space<vmem>>, %arg3: memref<128x128xf32, #tpu.memory_space<vmem>>, %arg4: memref<1x128xf32, #tpu.memory_space<vmem>>, %arg5: memref<16x128xf32, #tpu.memory_space<vmem>>) attributes {dimension_semantics = [#tpu.dimension_semantics<parallel>], iteration_bounds = array<i64: 1>, scalar_prefetch = 0 : i64, scratch_operands = 0 : i64, tpu.core_type = #tpu.core_type<tc>, window_params = [{transform_indices = @transform_0, window_bounds = array<i64: 16, 128>}, {pipeline_mode = #tpu.pipeline_mode<synchronous>, transform_indices = @transform_1, window_bounds = array<i64: 128, 128>}, {pipeline_mode = #tpu.pipeline_mode<synchronous>, transform_indices = @transform_2, window_bounds = array<i64: 128, 128>}, {pipeline_mode = #tpu.pipeline_mode<synchronous>, transform_indices = @transform_3, window_bounds = array<i64: 1, 128>}, {transform_indices = @transform_4, window_bounds = array<i64: 16, 128>}]} {
    %c0 = arith.constant 0 : index
    %c0_0 = arith.constant 0 : index
    %0 = vector.load %arg1[%c0, %c0_0] : memref<16x128xf32, #tpu.memory_space<vmem>>, vector<16x128xf32>
    %c0_1 = arith.constant 0 : index
    %c0_2 = arith.constant 0 : index
    %1 = vector.load %arg2[%c0_1, %c0_2] : memref<128x128xf32, #tpu.memory_space<vmem>>, vector<128x128xf32>
    %cst = arith.constant dense<0.000000e+00> : vector<16x128xf32>
    %2 = tpu.matmul %0, %1, %cst {dimension_numbers = #tpu.dot_dimension_numbers<[1], [0], [0], [1], [0, 0, 1, 1], [], []>} : vector<16x128xf32>, vector<128x128xf32>, vector<16x128xf32> -> vector<16x128xf32>
    %c0_3 = arith.constant 0 : index
    %c0_4 = arith.constant 0 : index
    %3 = vector.load %arg3[%c0_3, %c0_4] : memref<128x128xf32, #tpu.memory_space<vmem>>, vector<128x128xf32>
    %cst_5 = arith.constant dense<0.000000e+00> : vector<16x128xf32>
    %4 = tpu.matmul %2, %3, %cst_5 {dimension_numbers = #tpu.dot_dimension_numbers<[1], [0], [0], [1], [0, 0, 1, 1], [], []>} : vector<16x128xf32>, vector<128x128xf32>, vector<16x128xf32> -> vector<16x128xf32>
    %c0_6 = arith.constant 0 : index
    %c0_7 = arith.constant 0 : index
    %5 = vector.load %arg4[%c0_6, %c0_7] : memref<1x128xf32, #tpu.memory_space<vmem>>, vector<1x128xf32>
    %6 = vector.broadcast %5 : vector<1x128xf32> to vector<16x128xf32>
    %7 = arith.addf %4, %6 : vector<16x128xf32>
    %c0_8 = arith.constant 0 : index
    %c0_9 = arith.constant 0 : index
    %8 = vector.load %arg5[%c0_8, %c0_9] : memref<16x128xf32, #tpu.memory_space<vmem>>, vector<16x128xf32>
    tpu.vector_store %arg5[%c0_8, %c0_9], %7 {strides = array<i32>} : memref<16x128xf32, #tpu.memory_space<vmem>>, vector<16x128xf32>,
    return
  }
  func.func @transform_0(%arg0: i32) -> (i32, i32) {
    %c0_i32 = arith.constant 0 : i32
    %c0_i32_0 = arith.constant 0 : i32
    return %arg0, %c0_i32 : i32, i32
  }
  func.func @transform_1(%arg0: i32) -> (i32, i32) {
    %c0_i32 = arith.constant 0 : i32
    %c0_i32_0 = arith.constant 0 : i32
    %c0_i32_1 = arith.constant 0 : i32
    return %c0_i32, %c0_i32_0 : i32, i32
  }
  func.func @transform_2(%arg0: i32) -> (i32, i32) {
    %c0_i32 = arith.constant 0 : i32
    %c0_i32_0 = arith.constant 0 : i32
    %c0_i32_1 = arith.constant 0 : i32
    return %c0_i32, %c0_i32_0 : i32, i32
  }
  func.func @transform_3(%arg0: i32) -> (i32, i32) {
    %c0_i32 = arith.constant 0 : i32
    %c0_i32_0 = arith.constant 0 : i32
    %c0_i32_1 = arith.constant 0 : i32
    return %c0_i32, %c0_i32_0 : i32, i32
  }
  func.func @transform_4(%arg0: i32) -> (i32, i32) {
    %c0_i32 = arith.constant 0 : i32
    %c0_i32_0 = arith.constant 0 : i32
    return %arg0, %c0_i32 : i32, i32
  }
}

</mosaic_0001>

<llo_original>
// kernel: tpu_custom_call.1
$region0: #{tpu_custom_call.1}
  #allocation0 [shape = 'u32[]', space=smem, size = 0x4, offset = 0x4, fixed_abs, tag = 'smem constant byte address 0x4 - core index']
  #allocation1 [shape = 'u32[144,128]{1,0:T(1,128)}', space=vmem, size = 0x12000, scoped, tag = 'internal scratch']
  %s0 = inlined_call_operand.hbm [shape: f32[16,128], index: 0, kind: input, shape index: {}]
  %s1 = inlined_call_operand.hbm [shape: f32[128,128], index: 1, kind: input, shape index: {}]
  %s2 = inlined_call_operand.hbm [shape: f32[128,128], index: 2, kind: input, shape index: {}]
  %s3 = inlined_call_operand.vmem [shape: f32[1,128], index: 3, kind: input, shape index: {}]
  %s4 = inlined_call_operand.hbm [shape: f32[16,128], index: 4, kind: output, shape index: {}]
  %s5 = sld [smem:[#allocation0]]
  $region38: #{tpu_custom_call.1} parent=0
    _
  %s7 = ssub.s32 1, %s5
  %s8 = scalar_select 0, %s7, %s5
  $region1: #{tpu_custom_call.1} parent=0
    #allocation2 [shape = 'u8[8192]{0}', space=vmem, size = 0x2000, scoped, tag = 'input window, operand 0, single buffered']
    #allocation3 [shape = 's32[1]{0}', space=sflag, size = 0x4, scoped, tag = 'scoped memory for tpu_custom_call.1']
    #allocation4 [shape = 's32[1]{0}', space=sflag, size = 0x4, scoped, tag = 'scoped memory for tpu_custom_call.1']
    #allocation5 [shape = 'u8[65536]{0}', space=vmem, size = 0x10000, scoped, tag = 'input window, operand 1, single buffered']
    #allocation6 [shape = 's32[1]{0}', space=sflag, size = 0x4, scoped, tag = 'scoped memory for tpu_custom_call.1']
    #allocation7 [shape = 'u8[65536]{0}', space=vmem, size = 0x10000, scoped, tag = 'input window, operand 2, single buffered']
    #allocation8 [shape = 'u8[8192]{0}', space=vmem, size = 0x2000, scoped, tag = 'output window, operand 0, single buffered']
    %9 = vsyncpa [#allocation3], 0
    %10 = vsyncpa [#allocation6], 0
    %11 = vsyncpa [#allocation4], 0
    // Predicated region
    $region2: #{tpu_custom_call.1} parent=1 // pred_check
      _
    $region3: #{tpu_custom_call.1} parent=1 // pred_check_branch
      %13 = sbr.rel (0) target = $region5
    $region4: #{tpu_custom_call.1} parent=1 // pred_region
      %s15 = ssub.s32 256, 256
      %16 = vsyncadd [#allocation3], %s15
      %s17 = sshll.u32 [#allocation2], 4
      %s18 = int_to_ptr.vmem [resolvable:$true] %s17
      %23 = dma.hbm_to_vmem [thread:$0]  %s0, 256, %s18, [#allocation3], 128, 128, 8
    $region5: #{tpu_custom_call.1} parent=1 // pred_fallthru
      _
    // Predicated region
    $region6: #{tpu_custom_call.1} parent=1 // pred_check
      _
    $region7: #{tpu_custom_call.1} parent=1 // pred_check_branch
      %25 = sbr.rel (0) target = $region9
    $region8: #{tpu_custom_call.1} parent=1 // pred_region
      %s27 = ssub.s32 2048, 2048
      %28 = vsyncadd [#allocation6], %s27
      %s29 = sshll.u32 [#allocation5], 4
      %s30 = int_to_ptr.vmem [resolvable:$true] %s29
      %35 = dma.hbm_to_vmem [thread:$0]  %s1, 2048, %s30, [#allocation6], 128, 128, 8
    $region9: #{tpu_custom_call.1} parent=1 // pred_fallthru
      _
    // Predicated region
    $region10: #{tpu_custom_call.1} parent=1 // pred_check
      _
    $region11: #{tpu_custom_call.1} parent=1 // pred_check_branch
      %37 = sbr.rel (0) target = $region13
    $region12: #{tpu_custom_call.1} parent=1 // pred_region
      %s39 = ssub.s32 2048, 2048
      %40 = vsyncadd [#allocation6], %s39
      %s41 = sshll.u32 [#allocation7], 4
      %s42 = int_to_ptr.vmem [resolvable:$true] %s41
      %47 = dma.hbm_to_vmem [thread:$0]  %s2, 2048, %s42, [#allocation6], 128, 128, 8
    $region13: #{tpu_custom_call.1} parent=1 // pred_fallthru
      _
    // Predicated region
    $region14: #{tpu_custom_call.1} parent=1 // pred_check
      _
    $region15: #{tpu_custom_call.1} parent=1 // pred_check_branch
      %49 = sbr.rel (0) target = $region17
    $region16: #{tpu_custom_call.1} parent=1 // pred_region
      _
    $region17: #{tpu_custom_call.1} parent=1 // pred_fallthru
      _
    // Predicated region
    $region18: #{tpu_custom_call.1} parent=1 // pred_check
      _
    $region19: #{tpu_custom_call.1} parent=1 // pred_check_branch
      %51 = sbr.rel (0) target = $region21
    $region20: #{tpu_custom_call.1} parent=1 // pred_region
      %52 = dma.done [#allocation3], 256
    $region21: #{tpu_custom_call.1} parent=1 // pred_fallthru
      _
    // Predicated region
    $region22: #{tpu_custom_call.1} parent=1 // pred_check
      _
    $region23: #{tpu_custom_call.1} parent=1 // pred_check_branch
      %54 = sbr.rel (0) target = $region25
    $region24: #{tpu_custom_call.1} parent=1 // pred_region
      %55 = dma.done [#allocation6], 2048
    $region25: #{tpu_custom_call.1} parent=1 // pred_fallthru
      _
    // Predicated region
    $region26: #{tpu_custom_call.1} parent=1 // pred_check
      _
    $region27: #{tpu_custom_call.1} parent=1 // pred_check_branch
      %57 = sbr.rel (0) target = $region29
    $region28: #{tpu_custom_call.1} parent=1 // pred_region
      %58 = dma.done [#allocation6], 2048
    $region29: #{tpu_custom_call.1} parent=1 // pred_fallthru
      _
    %v59 = vld [vmem:[#allocation2] sm:$0xff]
    %v60 = vld [vmem:[#allocation2 + $0x8] sm:$0xff]
    %v61 = vld [vmem:[#allocation5] sm:$0xff]
    %v62 = vld [vmem:[#allocation5 + $0x8] sm:$0xff]
    %v63 = vld [vmem:[#allocation5 + $0x10] sm:$0xff]
    %v64 = vld [vmem:[#allocation5 + $0x18] sm:$0xff]
    %v65 = vld [vmem:[#allocation5 + $0x20] sm:$0xff]
    %v66 = vld [vmem:[#allocation5 + $0x28] sm:$0xff]
    %v67 = vld [vmem:[#allocation5 + $0x30] sm:$0xff]
    %v68 = vld [vmem:[#allocation5 + $0x38] sm:$0xff]
    %v69 = vld [vmem:[#allocation5 + $0x40] sm:$0xff]
    %v70 = vld [vmem:[#allocation5 + $0x48] sm:$0xff]
    %v71 = vld [vmem:[#allocation5 + $0x50] sm:$0xff]
    %v72 = vld [vmem:[#allocation5 + $0x58] sm:$0xff]
    %v73 = vld [vmem:[#allocation5 + $0x60] sm:$0xff]
    %v74 = vld [vmem:[#allocation5 + $0x68] sm:$0xff]
    %v75 = vld [vmem:[#allocation5 + $0x70] sm:$0xff]
    %v76 = vld [vmem:[#allocation5 + $0x78] sm:$0xff]
    %77 = vmatprep.subr.mxu0 0.0
    %78 = vmatpush1.msra.mxu0 %v61
    %79 = vmatprep.subr.mxu0 0.0
    %80 = vmatpush1.msra.mxu0 %v62
    %81 = vmatprep.subr.mxu0 0.0
    %82 = vmatpush1.msra.mxu0 %v63
    %83 = vmatprep.subr.mxu0 0.0
    %84 = vmatpush1.msra.mxu0 %v64
    %85 = vmatprep.subr.mxu0 0.0
    %86 = vmatpush1.msra.mxu0 %v65
    %87 = vmatprep.subr.mxu0 0.0
    %88 = vmatpush1.msra.mxu0 %v66
    %89 = vmatprep.subr.mxu0 0.0
    %90 = vmatpush1.msra.mxu0 %v67
    %91 = vmatprep.subr.mxu0 0.0
    %92 = vmatpush1.msra.mxu0 %v68
    %93 = vmatprep.subr.mxu0 0.0
    %94 = vmatpush1.msra.mxu0 %v69
    %95 = vmatprep.subr.mxu0 0.0
    %96 = vmatpush1.msra.mxu0 %v70
    %97 = vmatprep.subr.mxu0 0.0
    %98 = vmatpush1.msra.mxu0 %v71
    %99 = vmatprep.subr.mxu0 0.0
    %100 = vmatpush1.msra.mxu0 %v72
    %101 = vmatprep.subr.mxu0 0.0
    %102 = vmatpush1.msra.mxu0 %v73
    %103 = vmatprep.subr.mxu0 0.0
    %104 = vmatpush1.msra.mxu0 %v74
    %105 = vmatprep.subr.mxu0 0.0
    %106 = vmatpush1.msra.mxu0 %v75
    %107 = vmatprep.subr.mxu0 0.0
    %108 = vmatpush1.msra.mxu0 %v76
    %109 = vmatprep.subr.mxu0 0.0
    %110 = vmatpush1.msra.mxu0 0.0
    %111 = vmatprep.subr.mxu0 0.0
    %112 = vmatpush1.msra.mxu0 0.0
    %113 = vmatprep.subr.mxu0 0.0
    %114 = vmatpush1.msra.mxu0 0.0
    %115 = vmatprep.subr.mxu0 0.0
    %116 = vmatpush1.msra.mxu0 0.0
    %117 = vmatprep.subr.mxu0 0.0
    %118 = vmatpush1.msra.mxu0 0.0
    %119 = vmatprep.subr.mxu0 0.0
    %120 = vmatpush1.msra.mxu0 0.0
    %121 = vmatprep.subr.mxu0 0.0
    %122 = vmatpush1.msra.mxu0 0.0
    %123 = vmatprep.subr.mxu0 0.0
    %124 = vmatpush1.msra.mxu0 0.0
    %125 = vmatprep.subr.mxu0 0.0
    %126 = vmatpush1.msra.mxu0 0.0
    %127 = vmatprep.subr.mxu0 0.0
    %128 = vmatpush1.msra.mxu0 0.0
    %129 = vmatprep.subr.mxu0 0.0
    %130 = vmatpush1.msra.mxu0 0.0
    %131 = vmatprep.subr.mxu0 0.0
    %132 = vmatpush1.msra.mxu0 0.0
    %133 = vmatprep.subr.mxu0 0.0
    %134 = vmatpush1.msra.mxu0 0.0
    %135 = vmatprep.subr.mxu0 0.0
    %136 = vmatpush1.msra.mxu0 0.0
    %137 = vmatprep.subr.mxu0 0.0
    %138 = vmatpush1.msra.mxu0 0.0
    %139 = vmatprep.subr.mxu0 0.0
    %140 = vmatpush1.msra.mxu0 0.0
    %141 = vmatprep.mubr.f32.mxu0 0.0
    %142 = vmatmul.mubr.f32.gmra.mrb[0].mxu0 %v59
    %v143 = vpop.f32.mrb[0].mxu0
    %v144 = vadd.f32 0.0, %v143
    %v145 = vpop.f32.mrb[0].mxu0
    %146 = vmatprep.mubr.f32.mxu0 0.0
    %147 = vmatmul.mubr.f32.gmra.mrb[0].mxu0 %v60
    %v148 = vpop.f32.mrb[0].mxu0
    %v149 = vadd.f32 0.0, %v148
    %v150 = vpop.f32.mrb[0].mxu0
    %151 = vdwg.mxu0
    %v152 = vld [vmem:[#allocation7] sm:$0xff]
    %v153 = vld [vmem:[#allocation7 + $0x8] sm:$0xff]
    %v154 = vld [vmem:[#allocation7 + $0x10] sm:$0xff]
    %v155 = vld [vmem:[#allocation7 + $0x18] sm:$0xff]
    %v156 = vld [vmem:[#allocation7 + $0x20] sm:$0xff]
    %v157 = vld [vmem:[#allocation7 + $0x28] sm:$0xff]
    %v158 = vld [vmem:[#allocation7 + $0x30] sm:$0xff]
    %v159 = vld [vmem:[#allocation7 + $0x38] sm:$0xff]
    %v160 = vld [vmem:[#allocation7 + $0x40] sm:$0xff]
    %v161 = vld [vmem:[#allocation7 + $0x48] sm:$0xff]
    %v162 = vld [vmem:[#allocation7 + $0x50] sm:$0xff]
    %v163 = vld [vmem:[#allocation7 + $0x58] sm:$0xff]
    %v164 = vld [vmem:[#allocation7 + $0x60] sm:$0xff]
    %v165 = vld [vmem:[#allocation7 + $0x68] sm:$0xff]
    %v166 = vld [vmem:[#allocation7 + $0x70] sm:$0xff]
    %v167 = vld [vmem:[#allocation7 + $0x78] sm:$0xff]
    %v168 = vld [vmem:[%s3] sm:$0x1]
    %v170 = vlaneseq
    %v171 = vshrl.u32 %v170, 7
    %v172 = vsub.s32 0, %v171
    %v173 = vrot.slane %v168, %v172
    %175 = vmatprep.subr.mxu0 0.0
    %176 = vmatpush1.msra.mxu0 %v152
    %177 = vmatprep.subr.mxu0 0.0
    %178 = vmatpush1.msra.mxu0 %v153
    %179 = vmatprep.subr.mxu0 0.0
    %180 = vmatpush1.msra.mxu0 %v154
    %181 = vmatprep.subr.mxu0 0.0
    %182 = vmatpush1.msra.mxu0 %v155
    %183 = vmatprep.subr.mxu0 0.0
    %184 = vmatpush1.msra.mxu0 %v156
    %185 = vmatprep.subr.mxu0 0.0
    %186 = vmatpush1.msra.mxu0 %v157
    %187 = vmatprep.subr.mxu0 0.0
    %188 = vmatpush1.msra.mxu0 %v158
    %189 = vmatprep.subr.mxu0 0.0
    %190 = vmatpush1.msra.mxu0 %v159
    %191 = vmatprep.subr.mxu0 0.0
    %192 = vmatpush1.msra.mxu0 %v160
    %193 = vmatprep.subr.mxu0 0.0
    %194 = vmatpush1.msra.mxu0 %v161
    %195 = vmatprep.subr.mxu0 0.0
    %196 = vmatpush1.msra.mxu0 %v162
    %197 = vmatprep.subr.mxu0 0.0
    %198 = vmatpush1.msra.mxu0 %v163
    %199 = vmatprep.subr.mxu0 0.0
    %200 = vmatpush1.msra.mxu0 %v164
    %201 = vmatprep.subr.mxu0 0.0
    %202 = vmatpush1.msra.mxu0 %v165
    %203 = vmatprep.subr.mxu0 0.0
    %204 = vmatpush1.msra.mxu0 %v166
    %205 = vmatprep.subr.mxu0 0.0
    %206 = vmatpush1.msra.mxu0 %v167
    %207 = vmatprep.subr.mxu0 0.0
    %208 = vmatpush1.msra.mxu0 0.0
    %209 = vmatprep.subr.mxu0 0.0
    %210 = vmatpush1.msra.mxu0 0.0
    %211 = vmatprep.subr.mxu0 0.0
    %212 = vmatpush1.msra.mxu0 0.0
    %213 = vmatprep.subr.mxu0 0.0
    %214 = vmatpush1.msra.mxu0 0.0
    %215 = vmatprep.subr.mxu0 0.0
    %216 = vmatpush1.msra.mxu0 0.0
    %217 = vmatprep.subr.mxu0 0.0
    %218 = vmatpush1.msra.mxu0 0.0
    %219 = vmatprep.subr.mxu0 0.0
    %220 = vmatpush1.msra.mxu0 0.0
    %221 = vmatprep.subr.mxu0 0.0
    %222 = vmatpush1.msra.mxu0 0.0
    %223 = vmatprep.subr.mxu0 0.0
    %224 = vmatpush1.msra.mxu0 0.0
    %225 = vmatprep.subr.mxu0 0.0
    %226 = vmatpush1.msra.mxu0 0.0
    %227 = vmatprep.subr.mxu0 0.0
    %228 = vmatpush1.msra.mxu0 0.0
    %229 = vmatprep.subr.mxu0 0.0
    %230 = vmatpush1.msra.mxu0 0.0
    %231 = vmatprep.subr.mxu0 0.0
    %232 = vmatpush1.msra.mxu0 0.0
    %233 = vmatprep.subr.mxu0 0.0
    %234 = vmatpush1.msra.mxu0 0.0
    %235 = vmatprep.subr.mxu0 0.0
    %236 = vmatpush1.msra.mxu0 0.0
    %237 = vmatprep.subr.mxu0 0.0
    %238 = vmatpush1.msra.mxu0 0.0
    %239 = vmatprep.mubr.f32.mxu0 0.0
    %240 = vmatmul.mubr.f32.gmra.mrb[0].mxu0 %v144
    %v241 = vpop.f32.mrb[0].mxu0
    %v242 = vadd.f32 %v173, %v241
    %v243 = vpop.f32.mrb[0].mxu0
    %244 = vmatprep.mubr.f32.mxu0 0.0
    %245 = vmatmul.mubr.f32.gmra.mrb[0].mxu0 %v149
    %v246 = vpop.f32.mrb[0].mxu0
    %v247 = vadd.f32 %v173, %v246
    %v248 = vpop.f32.mrb[0].mxu0
    %249 = vdwg.mxu0
    %250 = vst [vmem:[#allocation8] sm:$0xff] %v242
    %251 = vst [vmem:[#allocation8 + $0x8] sm:$0xff] %v247
    // Predicated region
    $region30: #{tpu_custom_call.1} parent=1 // pred_check
      _
    $region31: #{tpu_custom_call.1} parent=1 // pred_check_branch
      %253 = sbr.rel (0) target = $region33
    $region32: #{tpu_custom_call.1} parent=1 // pred_region
      %s255 = ssub.s32 256, 256
      %256 = vsyncadd [#allocation4], %s255
      %s257 = sshll.u32 [#allocation8], 4
      %s258 = int_to_ptr.vmem [resolvable:$true] %s257
      %263 = dma.vmem_to_hbm [thread:$0]  %s258, 256, %s4, [#allocation4], 128, 128, 8
    $region33: #{tpu_custom_call.1} parent=1 // pred_fallthru
      _
    // Predicated region
    $region34: #{tpu_custom_call.1} parent=1 // pred_check
      _
    $region35: #{tpu_custom_call.1} parent=1 // pred_check_branch
      %265 = sbr.rel (0) target = $region37
    $region36: #{tpu_custom_call.1} parent=1 // pred_region
      %266 = dma.done [#allocation4], 256
    $region37: #{tpu_custom_call.1} parent=1 // pred_fallthru
      _
    %267 = vsyncpa [#allocation3], 1
    %268 = vsyncpa [#allocation6], 1
    %269 = vsyncpa [#allocation4], 1

</llo_original>
